<compile_context>
chip_gen: v7x
topology: tpu7x:2x2x1
jax: 0.10.0
libtpu: 0.0.40
codegen_flags: <defaults>
</compile_context>

<pallas_src>
import jax
import jax.numpy as jnp
from jax.experimental import pallas as pl
from jax.experimental.pallas import tpu as pltpu

_VMEM_LIMIT_BYTES = 32 * 1024 * 1024  # safe on v5e/v6e (128 MiB) and v7x (64 MiB)


def _round_up(x, m):
    return (x + m - 1) // m * m


def _make_block_kernel(K, dilation, pad, TL, has_downsample):
    """Fused TemporalBlock kernel for one (batch, L-tile) grid step."""

    def kernel(x_ref, w1_ref, b1_ref, w2_ref, b2_ref, *rest):
        i = 0
        if has_downsample:
            wd_ref, bd_ref = rest[0], rest[1]
            i = 2
        o_ref = rest[i]
        i += 1
        if pad > 0:
            xwin_ref, xs_ref, hwin_ref, hs_ref = rest[i:i + 4]

        t = pl.program_id(1)            # L-tile index (sequential, carries halo)
        cin = x_ref.shape[0]
        cout = o_ref.shape[0]
        x_cur = x_ref[...]              # (Cin, TL) compute dtype, lane-aligned

        if pad > 0:
            # ---- maintain the causal left halo carried across L tiles ----
            @pl.when(t == 0)
            def _():
                xwin_ref[:, :pad] = jnp.zeros((cin, pad), xwin_ref.dtype)
                hwin_ref[:, :pad] = jnp.zeros((cout, pad), hwin_ref.dtype)

            @pl.when(t > 0)
            def _():
                # last `pad` columns of the previous tile's window -> new halo
                xwin_ref[:, :pad] = xwin_ref[:, TL:TL + pad]
                hwin_ref[:, :pad] = hwin_ref[:, TL:TL + pad]

            xwin_ref[:, pad:] = x_cur

            # ---- conv1: gather K dilated taps into one (K*Cin, TL) operand ----
            for j in range(K):
                xs_ref[j * cin:(j + 1) * cin, :] = \
                    xwin_ref[:, j * dilation:j * dilation + TL]
            lhs1 = xs_ref[...]
        else:  # kernel_size == 1 -> plain 1x1 conv
            lhs1 = x_cur

        acc1 = jnp.dot(w1_ref[...], lhs1, preferred_element_type=jnp.float32)
        h = jnp.maximum(acc1 + b1_ref[...], 0.0)        # bias + relu1 in f32
        h_c = h.astype(o_ref.dtype)                     # dropout1 = identity (inference)

        # ---- conv2 (causal, dilated) on relu1 output ----
        if pad > 0:
            hwin_ref[:, pad:] = h_c
            for j in range(K):
                hs_ref[j * cout:(j + 1) * cout, :] = \
                    hwin_ref[:, j * dilation:j * dilation + TL]
            lhs2 = hs_ref[...]
        else:
            lhs2 = h_c

        acc2 = jnp.dot(w2_ref[...], lhs2, preferred_element_type=jnp.float32)
        out = jnp.maximum(acc2 + b2_ref[...], 0.0)      # bias + relu2 in f32

        # ---- residual path (reads the un-shifted, lane-aligned x tile) ----
        if has_downsample:
            res = jnp.dot(wd_ref[...], x_cur, preferred_element_type=jnp.float32)
            res = res + bd_ref[...]
        else:
            res = x_cur.astype(jnp.float32)

        o_ref[...] = jnp.maximum(out + res, 0.0).astype(o_ref.dtype)

    return kernel


def temporal_block_forward(x, params, *, kernel_size, dilation,
                           l_tile=256, compute_dtype=jnp.bfloat16):
    """One TemporalBlock.

    x: (N, Cin_padded, L_padded) with channels a multiple of 8 and L a
    multiple of the 128-aligned tile.  Returns (N, Cout_padded, L_padded).
    """
    N, Cin_p, Lp = x.shape
    K = kernel_size
    pad = (K - 1) * dilation

    w1, b1 = params["w1"], params["b1"]        # (Cout, Cin, K), (Cout,)
    w2, b2 = params["w2"], params["b2"]        # (Cout, Cout, K), (Cout,)
    Cout, Cin = w1.shape[0], w1.shape[1]
    Cin8, Cout8 = _round_up(Cin, 8), _round_up(Cout, 8)
    has_down = "wd" in params

    if Cin_p < Cin8:                            # standalone use: pad channels
        x = jnp.pad(x, ((0, 0), (0, Cin8 - Cin_p), (0, 0)))
    assert x.shape[1] == Cin8, (x.shape, Cin8)

    TL = min(max(128, (l_tile // 128) * 128), Lp)
    assert TL % 128 == 0 and Lp % TL == 0, (TL, Lp)

    # Fused per-conv weight: (Cout8, K*Cin8) with tap-major column blocks,
    # zero-padded channels. bf16 matmul inputs, f32 accumulation in-kernel.
    def fuse(w, cin_true, cin8, cout8):
        wp = jnp.zeros((cout8, cin8, K), w.dtype).at[:w.shape[0], :cin_true, :].set(w)
        return jnp.transpose(wp, (0, 2, 1)).reshape(cout8, K * cin8).astype(compute_dtype)

    def padb(b, cout8):
        return jnp.zeros((cout8, 1), jnp.float32).at[:b.shape[0], 0].set(
            b.astype(jnp.float32))

    w1f = fuse(w1, Cin, Cin8, Cout8)
    w2f = fuse(w2, Cout, Cout8, Cout8)
    b1c = padb(b1, Cout8)
    b2c = padb(b2, Cout8)

    x = x.astype(compute_dtype)
    inputs = [x, w1f, b1c, w2f, b2c]
    in_specs = [
        pl.BlockSpec((None, Cin8, TL), lambda b, t: (b, 0, t)),
        pl.BlockSpec((Cout8, K * Cin8), lambda b, t: (0, 0)),
        pl.BlockSpec((Cout8, 1), lambda b, t: (0, 0)),
        pl.BlockSpec((Cout8, K * Cout8), lambda b, t: (0, 0)),
        pl.BlockSpec((Cout8, 1), lambda b, t: (0, 0)),
    ]
    if has_down:
        wd = params["wd"].reshape(Cout, Cin)   # torch 1x1 conv weight (Cout, Cin, 1)
        wdp = jnp.zeros((Cout8, Cin8), jnp.float32).at[:Cout, :Cin].set(
            wd.astype(jnp.float32)).astype(compute_dtype)
        bdc = padb(params["bd"], Cout8)
        inputs += [wdp, bdc]
        in_specs += [
            pl.BlockSpec((Cout8, Cin8), lambda b, t: (0, 0)),
            pl.BlockSpec((Cout8, 1), lambda b, t: (0, 0)),
        ]

    scratch = []
    if pad > 0:
        scratch = [
            pltpu.VMEM((Cin8, pad + TL), compute_dtype),   # x window (halo carry)
            pltpu.VMEM((K * Cin8, TL), compute_dtype),     # fused conv1 LHS
            pltpu.VMEM((Cout8, pad + TL), compute_dtype),  # h window (halo carry)
            pltpu.VMEM((K * Cout8, TL), compute_dtype),    # fused conv2 LHS
        ]

    kernel = _make_block_kernel(K, dilation, pad, TL, has_down)

    out = pl.pallas_call(
        kernel,
        out_shape=jax.ShapeDtypeStruct((N, Cout8, Lp), compute_dtype),
        grid_spec=pltpu.PrefetchScalarGridSpec(
            num_scalar_prefetch=0,
            grid=(N, Lp // TL),
            in_specs=in_specs,
            out_specs=pl.BlockSpec((None, Cout8, TL), lambda b, t: (b, 0, t)),
            scratch_shapes=scratch,
        ),
        compiler_params=pltpu.CompilerParams(
            # L-tile axis must be "arbitrary": the causal halo is carried in
            # scratch across tiles.  Batch axis is parallel (megacore / v7x).
            dimension_semantics=("parallel", "arbitrary"),
            vmem_limit_bytes=_VMEM_LIMIT_BYTES),
    )(*inputs)
    return out


def temporal_conv_net_forward(x, params_list, *, kernel_size,
                              l_tile=256, compute_dtype=jnp.bfloat16):
    """TemporalConvNet: stacked TemporalBlocks, dilation = 2**i.

    x: (N, num_inputs, L) float.  Returns (N, num_channels[-1], L).
    Pads channels to a multiple of 8 and L to a multiple of the lane-aligned
    tile ONCE (right zero-padding is exact for causal convs), crops at the end.
    """
    N, C, L = x.shape
    TL = max(128, (l_tile // 128) * 128)
    TL = min(TL, _round_up(L, 128))
    Lp = _round_up(L, TL)
    C8 = _round_up(C, 8)

    xp = jnp.zeros((N, C8, Lp), compute_dtype).at[:, :C, :L].set(
        x.astype(compute_dtype))

    out = xp
    for i, p in enumerate(params_list):
        out = temporal_block_forward(out, p, kernel_size=kernel_size,
                                     dilation=2 ** i, l_tile=TL,
                                     compute_dtype=compute_dtype)
    Cout_last = params_list[-1]["w1"].shape[0]
    return out[:, :Cout_last, :L]


def init_tcn_params(key, num_inputs, num_channels, kernel_size):
    """Parameter init matching the PyTorch module's shapes.

    Conv weights ~ N(0, 0.01) (init_weights); biases ~ U(-1/sqrt(fan_in),
    1/sqrt(fan_in)) like PyTorch's default Conv1d bias init.
    """
    params = []
    for i, cout in enumerate(num_channels):
        cin = num_inputs if i == 0 else num_channels[i - 1]
        key, k0, k1, k2, k3, k4, k5 = jax.random.split(key, 7)
        p = {
            "w1": 0.01 * jax.random.normal(k0, (cout, cin, kernel_size), jnp.float32),
            "b1": (1.0 / jnp.sqrt(cin * kernel_size))
                  * jax.random.uniform(k1, (cout,), jnp.float32, -1.0, 1.0),
            "w2": 0.01 * jax.random.normal(k2, (cout, cout, kernel_size), jnp.float32),
            "b2": (1.0 / jnp.sqrt(cout * kernel_size))
                  * jax.random.uniform(k3, (cout,), jnp.float32, -1.0, 1.0),
        }
        if cin != cout:
            p["wd"] = 0.01 * jax.random.normal(k4, (cout, cin, 1), jnp.float32)
            p["bd"] = (1.0 / jnp.sqrt(cin)) \
                      * jax.random.uniform(k5, (cout,), jnp.float32, -1.0, 1.0)
        params.append(p)
    return params


# --------- pure-JAX reference (mirrors the bf16-in / f32-accumulate math) ---------
def _ref_causal_conv1d(x, w, b, dilation):
    pad = (w.shape[-1] - 1) * dilation
    y = jax.lax.conv_general_dilated(
        x, w, window_strides=(1,), padding=[(pad, 0)],
        rhs_dilation=(dilation,),
        dimension_numbers=("NCH", "OIH", "NCH"),
        preferred_element_type=jnp.float32)
    return y + b[None, :, None].astype(jnp.float32)


def _ref_block(x, p, dilation, cdt):
    h = jax.nn.relu(_ref_causal_conv1d(x, p["w1"].astype(cdt), p["b1"], dilation))
    h = h.astype(cdt)
    out = jax.nn.relu(_ref_causal_conv1d(h, p["w2"].astype(cdt), p["b2"], dilation))
    if "wd" in p:
        res = _ref_causal_conv1d(x, p["wd"].astype(cdt), p["bd"], 1)
    else:
        res = x.astype(jnp.float32)
    return jax.nn.relu(out + res).astype(cdt)


def _ref_tcn(x, params_list, compute_dtype=jnp.bfloat16):
    out = x.astype(compute_dtype)
    for i, p in enumerate(params_list):
        out = _ref_block(out, p, 2 ** i, compute_dtype)
    return out


if __name__ == "__main__":
    key = jax.random.PRNGKey(0)
    k_x, k_p = jax.random.split(key)

    # Small shapes: batch=2, num_inputs=4, num_channels=(8, 16, 16), K=2.
    # L=200 exercises right-pad-to-128-tile + crop; l_tile=128 gives 2 L-tiles
    # per sequence so the cross-tile causal halo carry is exercised.
    N, C_IN, L = 2, 4, 200
    NUM_CHANNELS = (8, 16, 16)   # layers 0,1 need downsample; layer 2 identity residual
    K = 2
    CDT = jnp.bfloat16

    x = jax.random.normal(k_x, (N, C_IN, L), jnp.float32)
    params = init_tcn_params(k_p, C_IN, NUM_CHANNELS, K)

    out = temporal_conv_net_forward(x, params, kernel_size=K,
                                    l_tile=128, compute_dtype=CDT)
    out = jax.block_until_ready(out)

    ref = jax.block_until_ready(_ref_tcn(x, params, compute_dtype=CDT))

    assert out.shape == (N, NUM_CHANNELS[-1], L), out.shape
    o32 = out.astype(jnp.float32)
    r32 = ref.astype(jnp.float32)
    assert jnp.allclose(o32, r32, atol=2e-2, rtol=2e-2), (
        float(jnp.max(jnp.abs(o32 - r32))))

    print("KERNEL_OK")
</pallas_src>

<mosaic_0001>
module attributes {stable_mosaic.version = 11 : i64} {
  func.func @kernel(%arg0: i32, %arg1: i32, %arg2: memref<1x8x128xbf16, #tpu.memory_space<vmem>>, %arg3: memref<8x16xbf16, #tpu.memory_space<vmem>>, %arg4: memref<8x1xf32, #tpu.memory_space<vmem>>, %arg5: memref<8x16xbf16, #tpu.memory_space<vmem>>, %arg6: memref<8x1xf32, #tpu.memory_space<vmem>>, %arg7: memref<8x8xbf16, #tpu.memory_space<vmem>>, %arg8: memref<8x1xf32, #tpu.memory_space<vmem>>, %arg9: memref<1x8x128xbf16, #tpu.memory_space<vmem>>, %arg10: memref<8x129xbf16, #tpu.memory_space<vmem>>, %arg11: memref<16x128xbf16, #tpu.memory_space<vmem>>, %arg12: memref<8x129xbf16, #tpu.memory_space<vmem>>, %arg13: memref<16x128xbf16, #tpu.memory_space<vmem>>) attributes {dimension_semantics = [#tpu.dimension_semantics<parallel>, #tpu.dimension_semantics<arbitrary>], iteration_bounds = array<i64: 2, 2>, scalar_prefetch = 0 : i64, scratch_operands = 4 : i64, tpu.core_type = #tpu.core_type<tc>, window_params = [{transform_indices = @transform_0, window_bounds = array<i64: 1, 8, 128>}, {pipeline_mode = #tpu.pipeline_mode<synchronous>, transform_indices = @transform_1, window_bounds = array<i64: 8, 16>}, {pipeline_mode = #tpu.pipeline_mode<synchronous>, transform_indices = @transform_2, window_bounds = array<i64: 8, 1>}, {pipeline_mode = #tpu.pipeline_mode<synchronous>, transform_indices = @transform_3, window_bounds = array<i64: 8, 16>}, {pipeline_mode = #tpu.pipeline_mode<synchronous>, transform_indices = @transform_4, window_bounds = array<i64: 8, 1>}, {pipeline_mode = #tpu.pipeline_mode<synchronous>, transform_indices = @transform_5, window_bounds = array<i64: 8, 8>}, {pipeline_mode = #tpu.pipeline_mode<synchronous>, transform_indices = @transform_6, window_bounds = array<i64: 8, 1>}, {transform_indices = @transform_7, window_bounds = array<i64: 1, 8, 128>}]} {
    %c0 = arith.constant 0 : index
    %c0_0 = arith.constant 0 : index
    %c0_1 = arith.constant 0 : index
    %0 = vector.load %arg2[%c0, %c0_0, %c0_1] : memref<1x8x128xbf16, #tpu.memory_space<vmem>>, vector<1x8x128xbf16>
    %1 = vector.shape_cast %0 : vector<1x8x128xbf16> to vector<8x128xbf16>
    %c0_i32 = arith.constant 0 : i32
    %2 = arith.cmpi eq, %arg1, %c0_i32 : i32
    %3 = arith.extui %2 : i1 to i32
    %c0_i32_2 = arith.constant 0 : i32
    %4 = arith.cmpi ne, %3, %c0_i32_2 : i32
    scf.if %4 {
      %cst_47 = arith.constant 0.000000e+00 : bf16
      %47 = vector.broadcast %cst_47 : bf16 to vector<8x1xbf16>
      %c0_48 = arith.constant 0 : index
      %c0_49 = arith.constant 0 : index
      %48 = vector.load %arg10[%c0_48, %c0_49] : memref<8x129xbf16, #tpu.memory_space<vmem>>, vector<8x1xbf16>
      tpu.vector_store %arg10[%c0_48, %c0_49], %47 {strides = array<i32>} : memref<8x129xbf16, #tpu.memory_space<vmem>>, vector<8x1xbf16>,
      %cst_50 = arith.constant 0.000000e+00 : bf16
      %49 = vector.broadcast %cst_50 : bf16 to vector<8x1xbf16>
      %c0_51 = arith.constant 0 : index
      %c0_52 = arith.constant 0 : index
      %50 = vector.load %arg12[%c0_51, %c0_52] : memref<8x129xbf16, #tpu.memory_space<vmem>>, vector<8x1xbf16>
      tpu.vector_store %arg12[%c0_51, %c0_52], %49 {strides = array<i32>} : memref<8x129xbf16, #tpu.memory_space<vmem>>, vector<8x1xbf16>,
    } else {
    }
    %c0_i32_3 = arith.constant 0 : i32
    %5 = arith.cmpi sgt, %arg1, %c0_i32_3 : i32
    %6 = arith.extui %5 : i1 to i32
    %c0_i32_4 = arith.constant 0 : i32
    %7 = arith.cmpi ne, %6, %c0_i32_4 : i32
    scf.if %7 {
      %c0_47 = arith.constant 0 : index
      %c128 = arith.constant 128 : index
      %47 = vector.load %arg10[%c0_47, %c128] : memref<8x129xbf16, #tpu.memory_space<vmem>>, vector<8x1xbf16>
      %c0_48 = arith.constant 0 : index
      %c0_49 = arith.constant 0 : index
      %48 = vector.load %arg10[%c0_48, %c0_49] : memref<8x129xbf16, #tpu.memory_space<vmem>>, vector<8x1xbf16>
      tpu.vector_store %arg10[%c0_48, %c0_49], %47 {strides = array<i32>} : memref<8x129xbf16, #tpu.memory_space<vmem>>, vector<8x1xbf16>,
      %c0_50 = arith.constant 0 : index
      %c128_51 = arith.constant 128 : index
      %49 = vector.load %arg12[%c0_50, %c128_51] : memref<8x129xbf16, #tpu.memory_space<vmem>>, vector<8x1xbf16>
      %c0_52 = arith.constant 0 : index
      %c0_53 = arith.constant 0 : index
      %50 = vector.load %arg12[%c0_52, %c0_53] : memref<8x129xbf16, #tpu.memory_space<vmem>>, vector<8x1xbf16>
      tpu.vector_store %arg12[%c0_52, %c0_53], %49 {strides = array<i32>} : memref<8x129xbf16, #tpu.memory_space<vmem>>, vector<8x1xbf16>,
    } else {
    }
    %c0_5 = arith.constant 0 : index
    %c1 = arith.constant 1 : index
    %8 = vector.load %arg10[%c0_5, %c1] : memref<8x129xbf16, #tpu.memory_space<vmem>>, vector<8x128xbf16>
    tpu.vector_store %arg10[%c0_5, %c1], %1 {strides = array<i32>} : memref<8x129xbf16, #tpu.memory_space<vmem>>, vector<8x128xbf16>,
    %c0_6 = arith.constant 0 : index
    %c0_7 = arith.constant 0 : index
    %9 = vector.load %arg10[%c0_6, %c0_7] : memref<8x129xbf16, #tpu.memory_space<vmem>>, vector<8x128xbf16>
    %c0_8 = arith.constant 0 : index
    %c0_9 = arith.constant 0 : index
    %10 = vector.load %arg11[%c0_8, %c0_9] : memref<16x128xbf16, #tpu.memory_space<vmem>>, vector<8x128xbf16>
    tpu.vector_store %arg11[%c0_8, %c0_9], %9 {strides = array<i32>} : memref<16x128xbf16, #tpu.memory_space<vmem>>, vector<8x128xbf16>,
    %c0_10 = arith.constant 0 : index
    %c1_11 = arith.constant 1 : index
    %11 = vector.load %arg10[%c0_10, %c1_11] : memref<8x129xbf16, #tpu.memory_space<vmem>>, vector<8x128xbf16>
    %c8 = arith.constant 8 : index
    %c0_12 = arith.constant 0 : index
    %12 = vector.load %arg11[%c8, %c0_12] : memref<16x128xbf16, #tpu.memory_space<vmem>>, vector<8x128xbf16>
    tpu.vector_store %arg11[%c8, %c0_12], %11 {strides = array<i32>} : memref<16x128xbf16, #tpu.memory_space<vmem>>, vector<8x128xbf16>,
    %c0_13 = arith.constant 0 : index
    %c0_14 = arith.constant 0 : index
    %13 = vector.load %arg11[%c0_13, %c0_14] : memref<16x128xbf16, #tpu.memory_space<vmem>>, vector<16x128xbf16>
    %c0_15 = arith.constant 0 : index
    %c0_16 = arith.constant 0 : index
    %14 = vector.load %arg3[%c0_15, %c0_16] : memref<8x16xbf16, #tpu.memory_space<vmem>>, vector<8x16xbf16>
    %cst = arith.constant dense<0.000000e+00> : vector<8x128xf32>
    %15 = tpu.matmul %14, %13, %cst {dimension_numbers = #tpu.dot_dimension_numbers<[1], [0], [0], [1], [0, 0, 1, 1], [], []>} : vector<8x16xbf16>, vector<16x128xbf16>, vector<8x128xf32> -> vector<8x128xf32>
    %c0_17 = arith.constant 0 : index
    %c0_18 = arith.constant 0 : index
    %16 = vector.load %arg4[%c0_17, %c0_18] : memref<8x1xf32, #tpu.memory_space<vmem>>, vector<8x1xf32>
    %17 = vector.broadcast %16 : vector<8x1xf32> to vector<8x128xf32>
    %18 = arith.addf %15, %17 : vector<8x128xf32>
    %cst_19 = arith.constant 0.000000e+00 : f32
    %19 = vector.broadcast %cst_19 : f32 to vector<8x128xf32>
    %20 = arith.maximumf %18, %19 : vector<8x128xf32>
    %21 = arith.truncf %20 : vector<8x128xf32> to vector<8x128xbf16>
    %c0_20 = arith.constant 0 : index
    %c1_21 = arith.constant 1 : index
    %22 = vector.load %arg12[%c0_20, %c1_21] : memref<8x129xbf16, #tpu.memory_space<vmem>>, vector<8x128xbf16>
    tpu.vector_store %arg12[%c0_20, %c1_21], %21 {strides = array<i32>} : memref<8x129xbf16, #tpu.memory_space<vmem>>, vector<8x128xbf16>,
    %c0_22 = arith.constant 0 : index
    %c0_23 = arith.constant 0 : index
    %23 = vector.load %arg12[%c0_22, %c0_23] : memref<8x129xbf16, #tpu.memory_space<vmem>>, vector<8x128xbf16>
    %c0_24 = arith.constant 0 : index
    %c0_25 = arith.constant 0 : index
    %24 = vector.load %arg13[%c0_24, %c0_25] : memref<16x128xbf16, #tpu.memory_space<vmem>>, vector<8x128xbf16>
    tpu.vector_store %arg13[%c0_24, %c0_25], %23 {strides = array<i32>} : memref<16x128xbf16, #tpu.memory_space<vmem>>, vector<8x128xbf16>,
    %c0_26 = arith.constant 0 : index
    %c1_27 = arith.constant 1 : index
    %25 = vector.load %arg12[%c0_26, %c1_27] : memref<8x129xbf16, #tpu.memory_space<vmem>>, vector<8x128xbf16>
    %c8_28 = arith.constant 8 : index
    %c0_29 = arith.constant 0 : index
    %26 = vector.load %arg13[%c8_28, %c0_29] : memref<16x128xbf16, #tpu.memory_space<vmem>>, vector<8x128xbf16>
    tpu.vector_store %arg13[%c8_28, %c0_29], %25 {strides = array<i32>} : memref<16x128xbf16, #tpu.memory_space<vmem>>, vector<8x128xbf16>,
    %c0_30 = arith.constant 0 : index
    %c0_31 = arith.constant 0 : index
    %27 = vector.load %arg13[%c0_30, %c0_31] : memref<16x128xbf16, #tpu.memory_space<vmem>>, vector<16x128xbf16>
    %c0_32 = arith.constant 0 : index
    %c0_33 = arith.constant 0 : index
    %28 = vector.load %arg5[%c0_32, %c0_33] : memref<8x16xbf16, #tpu.memory_space<vmem>>, vector<8x16xbf16>
    %cst_34 = arith.constant dense<0.000000e+00> : vector<8x128xf32>
    %29 = tpu.matmul %28, %27, %cst_34 {dimension_numbers = #tpu.dot_dimension_numbers<[1], [0], [0], [1], [0, 0, 1, 1], [], []>} : vector<8x16xbf16>, vector<16x128xbf16>, vector<8x128xf32> -> vector<8x128xf32>
    %c0_35 = arith.constant 0 : index
    %c0_36 = arith.constant 0 : index
    %30 = vector.load %arg6[%c0_35, %c0_36] : memref<8x1xf32, #tpu.memory_space<vmem>>, vector<8x1xf32>
    %31 = vector.broadcast %30 : vector<8x1xf32> to vector<8x128xf32>
    %32 = arith.addf %29, %31 : vector<8x128xf32>
    %cst_37 = arith.constant 0.000000e+00 : f32
    %33 = vector.broadcast %cst_37 : f32 to vector<8x128xf32>
    %34 = arith.maximumf %32, %33 : vector<8x128xf32>
    %c0_38 = arith.constant 0 : index
    %c0_39 = arith.constant 0 : index
    %35 = vector.load %arg7[%c0_38, %c0_39] : memref<8x8xbf16, #tpu.memory_space<vmem>>, vector<8x8xbf16>
    %cst_40 = arith.constant dense<0.000000e+00> : vector<8x128xf32>
    %36 = tpu.matmul %35, %1, %cst_40 {dimension_numbers = #tpu.dot_dimension_numbers<[1], [0], [0], [1], [0, 0, 1, 1], [], []>} : vector<8x8xbf16>, vector<8x128xbf16>, vector<8x128xf32> -> vector<8x128xf32>
    %c0_41 = arith.constant 0 : index
    %c0_42 = arith.constant 0 : index
    %37 = vector.load %arg8[%c0_41, %c0_42] : memref<8x1xf32, #tpu.memory_space<vmem>>, vector<8x1xf32>
    %38 = vector.broadcast %37 : vector<8x1xf32> to vector<8x128xf32>
    %39 = arith.addf %36, %38 : vector<8x128xf32>
    %40 = arith.addf %34, %39 : vector<8x128xf32>
    %cst_43 = arith.constant 0.000000e+00 : f32
    %41 = vector.broadcast %cst_43 : f32 to vector<8x128xf32>
    %42 = arith.maximumf %40, %41 : vector<8x128xf32>
    %43 = arith.truncf %42 : vector<8x128xf32> to vector<8x128xbf16>
    %c0_44 = arith.constant 0 : index
    %c0_45 = arith.constant 0 : index
    %c0_46 = arith.constant 0 : index
    %44 = vector.load %arg9[%c0_44, %c0_45, %c0_46] : memref<1x8x128xbf16, #tpu.memory_space<vmem>>, vector<1x8x128xbf16>
    %45 = vector.shape_cast %44 : vector<1x8x128xbf16> to vector<8x128xbf16>
    %46 = vector.shape_cast %43 : vector<8x128xbf16> to vector<1x8x128xbf16>
    tpu.vector_store %arg9[%c0_44, %c0_45, %c0_46], %46 {strides = array<i32>} : memref<1x8x128xbf16, #tpu.memory_space<vmem>>, vector<1x8x128xbf16>,
    return
  }
  func.func @transform_0(%arg0: i32, %arg1: i32) -> (i32, i32, i32) {
    %c0_i32 = arith.constant 0 : i32
    %c0_i32_0 = arith.constant 0 : i32
    return %arg0, %c0_i32, %arg1 : i32, i32, i32
  }
  func.func @transform_1(%arg0: i32, %arg1: i32) -> (i32, i32) {
    %c0_i32 = arith.constant 0 : i32
    %c0_i32_0 = arith.constant 0 : i32
    %c0_i32_1 = arith.constant 0 : i32
    return %c0_i32, %c0_i32_0 : i32, i32
  }
  func.func @transform_2(%arg0: i32, %arg1: i32) -> (i32, i32) {
    %c0_i32 = arith.constant 0 : i32
    %c0_i32_0 = arith.constant 0 : i32
    %c0_i32_1 = arith.constant 0 : i32
    return %c0_i32, %c0_i32_0 : i32, i32
  }
  func.func @transform_3(%arg0: i32, %arg1: i32) -> (i32, i32) {
    %c0_i32 = arith.constant 0 : i32
    %c0_i32_0 = arith.constant 0 : i32
    %c0_i32_1 = arith.constant 0 : i32
    return %c0_i32, %c0_i32_0 : i32, i32
  }
  func.func @transform_4(%arg0: i32, %arg1: i32) -> (i32, i32) {
    %c0_i32 = arith.constant 0 : i32
    %c0_i32_0 = arith.constant 0 : i32
    %c0_i32_1 = arith.constant 0 : i32
    return %c0_i32, %c0_i32_0 : i32, i32
  }
  func.func @transform_5(%arg0: i32, %arg1: i32) -> (i32, i32) {
    %c0_i32 = arith.constant 0 : i32
    %c0_i32_0 = arith.constant 0 : i32
    %c0_i32_1 = arith.constant 0 : i32
    return %c0_i32, %c0_i32_0 : i32, i32
  }
  func.func @transform_6(%arg0: i32, %arg1: i32) -> (i32, i32) {
    %c0_i32 = arith.constant 0 : i32
    %c0_i32_0 = arith.constant 0 : i32
    %c0_i32_1 = arith.constant 0 : i32
    return %c0_i32, %c0_i32_0 : i32, i32
  }
  func.func @transform_7(%arg0: i32, %arg1: i32) -> (i32, i32, i32) {
    %c0_i32 = arith.constant 0 : i32
    %c0_i32_0 = arith.constant 0 : i32
    return %arg0, %c0_i32, %arg1 : i32, i32, i32
  }
}

</mosaic_0001>

<llo_original>
// kernel: tpu_custom_call.1
$region0: #{tpu_custom_call.1}
  #allocation0 [shape = 'u32[]', space=smem, size = 0x4, offset = 0x4, fixed_abs, tag = 'smem constant byte address 0x4 - core index']
  #allocation1 [shape = 'u32[144,128]{1,0:T(1,128)}', space=vmem, size = 0x12000, scoped, tag = 'internal scratch']
  #allocation2 [shape = 'bf16[8,129]{1,0:T(8,128)(2,1)}', space=vmem, size = 0x1000, scoped, tag = 'scratch operand']
  #allocation3 [shape = 'bf16[16,128]{1,0:T(16,128)(2,1)}', space=vmem, size = 0x1000, scoped, tag = 'scratch operand']
  #allocation4 [shape = 'bf16[8,129]{1,0:T(8,128)(2,1)}', space=vmem, size = 0x1000, scoped, tag = 'scratch operand']
  #allocation5 [shape = 'bf16[16,128]{1,0:T(16,128)(2,1)}', space=vmem, size = 0x1000, scoped, tag = 'scratch operand']
  %s0 = inlined_call_operand.vmem [shape: bf16[2,8,256], index: 0, kind: input, shape index: {}]
  %s1 = inlined_call_operand.vmem [shape: bf16[8,16], index: 1, kind: input, shape index: {}]
  %s2 = inlined_call_operand.vmem [shape: f32[8,1], index: 2, kind: input, shape index: {}]
  %s3 = inlined_call_operand.vmem [shape: bf16[8,16], index: 3, kind: input, shape index: {}]
  %s4 = inlined_call_operand.vmem [shape: f32[8,1], index: 4, kind: input, shape index: {}]
  %s5 = inlined_call_operand.vmem [shape: bf16[8,8], index: 5, kind: input, shape index: {}]
  %s6 = inlined_call_operand.vmem [shape: f32[8,1], index: 6, kind: input, shape index: {}]
  %s7 = inlined_call_operand.hbm [shape: bf16[2,8,256], index: 7, kind: output, shape index: {}]
  %s8 = sld [smem:[#allocation0]]
  $region69: #{tpu_custom_call.1} parent=0
    _
  %s10 = ssub.s32 1, %s8
  %s11 = scalar_select 0, %s10, %s8
  $region1: #{tpu_custom_call.1} parent=0
    #allocation6 [shape = 'u8[4096]{0}', space=vmem, size = 0x1000, scoped, tag = 'output window, operand 0']
    #allocation7 [shape = 's32[2]{0}', space=sflag, size = 0x8, scoped, tag = 'scoped memory for tpu_custom_call.1']
    %12 = vsyncpa [#allocation7], 0
    %s13 = scalar_lea.sflag [#allocation7], 1
    %14 = vsyncpa %s13, 0
    loop: start=0, step=1, limit=6
    $region2: #{tpu_custom_call.1} parent=1 // loop_pre_header
      _
    $region3: #{tpu_custom_call.1} parent=1 // loop_header
      %s16 = sphi 0, %s20
      %p17 = scmp.ge.s32.totalorder %s16, 6
      %s23 = sphi 0, %s35
      %s24 = sphi 0, %s31
      %s25 = sphi 0, %s23
      %s26 = sphi 0, %s24
      %s27 = sphi 0, %s25
      %s28 = sphi 0, %s26
      %s40 = sphi 0, %s42
      %s43 = sphi 0, %s40
      %s44 = sphi 0, %s43
      %s60 = sphi 0, %s44
      %s64 = sphi 0, %s64
      %s66 = sphi 0, %s64
      %s67 = sphi 0, %s66
      %s81 = sphi 0, %s67
      %s85 = sphi 0, %s85
      %s87 = sphi 0, %s85
      %s88 = sphi 0, %s87
      %s102 = sphi 0, %s88
      %s106 = sphi 0, %s106
      %s108 = sphi 0, %s106
      %s109 = sphi 0, %s108
      %s123 = sphi 0, %s109
      %s127 = sphi 0, %s127
      %s129 = sphi 0, %s127
      %s130 = sphi 0, %s129
      %s144 = sphi 0, %s130
      %s148 = sphi 0, %s148
      %s150 = sphi 0, %s148
      %s151 = sphi 0, %s150
      %s165 = sphi 0, %s151
      %s169 = sphi 0, %s169
      %s171 = sphi 0, %s169
      %s172 = sphi 0, %s171
      %s186 = sphi 0, %s172
      %s194 = sphi 0, %s196
      %s197 = sphi 0, %s194
      %s198 = sphi 0, %s197
      %s214 = sphi 0, %s198
    $region4: #{tpu_custom_call.1} parent=1 // loop_header_branch
      %19 = sbr.rel (%p17) target = $region8
    $region5: #{tpu_custom_call.1} parent=1 // loop_body
      %s21 = ssub.s32 %s16, 1
      %s22 = ssub.s32 %s16, 2
      %s29 = sadd.s32 1, %s24
      %p30 = scmp.ge.s32.totalorder %s29, 2
      %s31 = scalar_select %p30, 0, %s29
      %s32 = sadd.s32 1, %s23
      %s33 = scalar_select %p30, %s32, %s23
      %p34 = scmp.ge.s32.totalorder %s33, 2
      %s35 = scalar_select %p34, 0, %s33
      %s36 = ssub.s32 %s23, %s35
      %s37 = ssub.s32 %s24, %s31
      %s38 = sor.u32 %s36, %s37
      %p39 = scmp.eq.s32.totalorder %s38, 0
      %s41 = sadd.s32 %s40, 1
      %s42 = scalar_select %p39, %s40, %s41
      %p45 = pneg %p39
      %p46 = scmp.eq.s32.totalorder %s16, 3
      %p47 = por %p45, %p46
      %p48 = scmp.ne.s32.totalorder %s40, %s43
      %p49 = scmp.eq.s32.totalorder %s16, 0
      %p50 = por %p48, %p49
      %p51 = scmp.ne.s32.totalorder %s40, %s43
      %p52 = scmp.eq.s32.totalorder %s21, 3
      %p53 = por %p51, %p52
      %p54 = scmp.ne.s32.totalorder %s43, %s44
      %p55 = scmp.eq.s32.totalorder %s21, 0
      %p56 = por %p54, %p55
      %p57 = scmp.ne.s32.totalorder %s43, %s44
      %p58 = scmp.eq.s32.totalorder %s22, 3
      %p59 = por %p57, %p58
      %p61 = scmp.ne.s32.totalorder %s44, %s60
      %p62 = scmp.eq.s32.totalorder %s22, 0
      %p63 = por %p61, %p62
      %s65 = sadd.s32 %s64, 1
      %p68 = scmp.eq.s32.totalorder %s16, 3
      %p69 = scmp.ne.s32.totalorder %s64, %s66
      %p70 = scmp.eq.s32.totalorder %s16, 0
      %p71 = por %p69, %p70
      %p72 = scmp.ne.s32.totalorder %s64, %s66
      %p73 = scmp.eq.s32.totalorder %s21, 3
      %p74 = por %p72, %p73
      %p75 = scmp.ne.s32.totalorder %s66, %s67
      %p76 = scmp.eq.s32.totalorder %s21, 0
      %p77 = por %p75, %p76
      %p78 = scmp.ne.s32.totalorder %s66, %s67
      %p79 = scmp.eq.s32.totalorder %s22, 3
      %p80 = por %p78, %p79
      %p82 = scmp.ne.s32.totalorder %s67, %s81
      %p83 = scmp.eq.s32.totalorder %s22, 0
      %p84 = por %p82, %p83
      %s86 = sadd.s32 %s85, 1
      %p89 = scmp.eq.s32.totalorder %s16, 3
      %p90 = scmp.ne.s32.totalorder %s85, %s87
      %p91 = scmp.eq.s32.totalorder %s16, 0
      %p92 = por %p90, %p91
      %p93 = scmp.ne.s32.totalorder %s85, %s87
      %p94 = scmp.eq.s32.totalorder %s21, 3
      %p95 = por %p93, %p94
      %p96 = scmp.ne.s32.totalorder %s87, %s88
      %p97 = scmp.eq.s32.totalorder %s21, 0
      %p98 = por %p96, %p97
      %p99 = scmp.ne.s32.totalorder %s87, %s88
      %p100 = scmp.eq.s32.totalorder %s22, 3
      %p101 = por %p99, %p100
      %p103 = scmp.ne.s32.totalorder %s88, %s102
      %p104 = scmp.eq.s32.totalorder %s22, 0
      %p105 = por %p103, %p104
      %s107 = sadd.s32 %s106, 1
      %p110 = scmp.eq.s32.totalorder %s16, 3
      %p111 = scmp.ne.s32.totalorder %s106, %s108
      %p112 = scmp.eq.s32.totalorder %s16, 0
      %p113 = por %p111, %p112
      %p114 = scmp.ne.s32.totalorder %s106, %s108
      %p115 = scmp.eq.s32.totalorder %s21, 3
      %p116 = por %p114, %p115
      %p117 = scmp.ne.s32.totalorder %s108, %s109
      %p118 = scmp.eq.s32.totalorder %s21, 0
      %p119 = por %p117, %p118
      %p120 = scmp.ne.s32.totalorder %s108, %s109
      %p121 = scmp.eq.s32.totalorder %s22, 3
      %p122 = por %p120, %p121
      %p124 = scmp.ne.s32.totalorder %s109, %s123
      %p125 = scmp.eq.s32.totalorder %s22, 0
      %p126 = por %p124, %p125
      %s128 = sadd.s32 %s127, 1
      %p131 = scmp.eq.s32.totalorder %s16, 3
      %p132 = scmp.ne.s32.totalorder %s127, %s129
      %p133 = scmp.eq.s32.totalorder %s16, 0
      %p134 = por %p132, %p133
      %p135 = scmp.ne.s32.totalorder %s127, %s129
      %p136 = scmp.eq.s32.totalorder %s21, 3
      %p137 = por %p135, %p136
      %p138 = scmp.ne.s32.totalorder %s129, %s130
      %p139 = scmp.eq.s32.totalorder %s21, 0
      %p140 = por %p138, %p139
      %p141 = scmp.ne.s32.totalorder %s129, %s130
      %p142 = scmp.eq.s32.totalorder %s22, 3
      %p143 = por %p141, %p142
      %p145 = scmp.ne.s32.totalorder %s130, %s144
      %p146 = scmp.eq.s32.totalorder %s22, 0
      %p147 = por %p145, %p146
      %s149 = sadd.s32 %s148, 1
      %p152 = scmp.eq.s32.totalorder %s16, 3
      %p153 = scmp.ne.s32.totalorder %s148, %s150
      %p154 = scmp.eq.s32.totalorder %s16, 0
      %p155 = por %p153, %p154
      %p156 = scmp.ne.s32.totalorder %s148, %s150
      %p157 = scmp.eq.s32.totalorder %s21, 3
      %p158 = por %p156, %p157
      %p159 = scmp.ne.s32.totalorder %s150, %s151
      %p160 = scmp.eq.s32.totalorder %s21, 0
      %p161 = por %p159, %p160
      %p162 = scmp.ne.s32.totalorder %s150, %s151
      %p163 = scmp.eq.s32.totalorder %s22, 3
      %p164 = por %p162, %p163
      %p166 = scmp.ne.s32.totalorder %s151, %s165
      %p167 = scmp.eq.s32.totalorder %s22, 0
      %p168 = por %p166, %p167
      %s170 = sadd.s32 %s169, 1
      %p173 = scmp.eq.s32.totalorder %s16, 3
      %p174 = scmp.ne.s32.totalorder %s169, %s171
      %p175 = scmp.eq.s32.totalorder %s16, 0
      %p176 = por %p174, %p175
      %p177 = scmp.ne.s32.totalorder %s169, %s171
      %p178 = scmp.eq.s32.totalorder %s21, 3
      %p179 = por %p177, %p178
      %p180 = scmp.ne.s32.totalorder %s171, %s172
      %p181 = scmp.eq.s32.totalorder %s21, 0
      %p182 = por %p180, %p181
      %p183 = scmp.ne.s32.totalorder %s171, %s172
      %p184 = scmp.eq.s32.totalorder %s22, 3
      %p185 = por %p183, %p184
      %p187 = scmp.ne.s32.totalorder %s172, %s186
      %p188 = scmp.eq.s32.totalorder %s22, 0
      %p189 = por %p187, %p188
      %s190 = ssub.s32 %s23, %s35
      %s191 = ssub.s32 %s24, %s31
      %s192 = sor.u32 %s190, %s191
      %p193 = scmp.eq.s32.totalorder %s192, 0
      %s195 = sadd.s32 %s194, 1
      %s196 = scalar_select %p193, %s194, %s195
      %p199 = pneg %p193
      %p200 = scmp.eq.s32.totalorder %s16, 3
      %p201 = por %p199, %p200
      %p202 = scmp.ne.s32.totalorder %s194, %s197
      %p203 = scmp.eq.s32.totalorder %s16, 0
      %p204 = por %p202, %p203
      %p205 = scmp.ne.s32.totalorder %s194, %s197
      %p206 = scmp.eq.s32.totalorder %s21, 3
      %p207 = por %p205, %p206
      %p208 = scmp.ne.s32.totalorder %s197, %s198
      %p209 = scmp.eq.s32.totalorder %s21, 0
      %p210 = por %p208, %p209
      %p211 = scmp.ne.s32.totalorder %s197, %s198
      %p212 = scmp.eq.s32.totalorder %s22, 3
      %p213 = por %p211, %p212
      %p215 = scmp.ne.s32.totalorder %s198, %s214
      %p216 = scmp.eq.s32.totalorder %s22, 0
      %p217 = por %p215, %p216
      %p218 = scmp.le.s32.totalorder 1, %s16
      %p219 = scmp.lt.s32.totalorder %s16, 5
      %p220 = pnand %p218, %p219
      %p221 = pneg %p220
      // Predicated region
      $region9: #{tpu_custom_call.1} parent=5 // pred_check
        _
      $region10: #{tpu_custom_call.1} parent=5 // pred_check_branch
        %223 = sbr.rel (%p220) target = $region12
      $region11: #{tpu_custom_call.1} parent=5 // pred_region
        %s224 = ssub.s32 %s16, 1
        // Predicated region
        $region13: #{tpu_custom_call.1} parent=11 // pred_check
          %p225 = pneg %p77
        $region14: #{tpu_custom_call.1} parent=11 // pred_check_branch
          %227 = sbr.rel (%p225) target = $region16
        $region15: #{tpu_custom_call.1} parent=11 // pred_region
          _
        $region16: #{tpu_custom_call.1} parent=11 // pred_fallthru
          _
        // Predicated region
        $region17: #{tpu_custom_call.1} parent=11 // pred_check
          %p228 = pneg %p98
        $region18: #{tpu_custom_call.1} parent=11 // pred_check_branch
          %230 = sbr.rel (%p228) target = $region20
        $region19: #{tpu_custom_call.1} parent=11 // pred_region
          _
        $region20: #{tpu_custom_call.1} parent=11 // pred_fallthru
          _
        // Predicated region
        $region21: #{tpu_custom_call.1} parent=11 // pred_check
          %p231 = pneg %p119
        $region22: #{tpu_custom_call.1} parent=11 // pred_check_branch
          %233 = sbr.rel (%p231) target = $region24
        $region23: #{tpu_custom_call.1} parent=11 // pred_region
          _
        $region24: #{tpu_custom_call.1} parent=11 // pred_fallthru
          _
        // Predicated region
        $region25: #{tpu_custom_call.1} parent=11 // pred_check
          %p234 = pneg %p140
        $region26: #{tpu_custom_call.1} parent=11 // pred_check_branch
          %236 = sbr.rel (%p234) target = $region28
        $region27: #{tpu_custom_call.1} parent=11 // pred_region
          _
        $region28: #{tpu_custom_call.1} parent=11 // pred_fallthru
          _
        // Predicated region
        $region29: #{tpu_custom_call.1} parent=11 // pred_check
          %p237 = pneg %p161
        $region30: #{tpu_custom_call.1} parent=11 // pred_check_branch
          %239 = sbr.rel (%p237) target = $region32
        $region31: #{tpu_custom_call.1} parent=11 // pred_region
          _
        $region32: #{tpu_custom_call.1} parent=11 // pred_fallthru
          _
        // Predicated region
        $region33: #{tpu_custom_call.1} parent=11 // pred_check
          %p240 = pneg %p182
        $region34: #{tpu_custom_call.1} parent=11 // pred_check_branch
          %242 = sbr.rel (%p240) target = $region36
        $region35: #{tpu_custom_call.1} parent=11 // pred_region
          _
        $region36: #{tpu_custom_call.1} parent=11 // pred_fallthru
          _
      $region12: #{tpu_custom_call.1} parent=5 // pred_fallthru
        _
      %p243 = scmp.lt.s32.totalorder %s16, 4
      // Predicated region
      $region37: #{tpu_custom_call.1} parent=5 // pred_check
        %p244 = pneg %p243
      $region38: #{tpu_custom_call.1} parent=5 // pred_check_branch
        %246 = sbr.rel (%p244) target = $region40
      $region39: #{tpu_custom_call.1} parent=5 // pred_region
        // Predicated region
        $region41: #{tpu_custom_call.1} parent=39 // pred_check
          %p247 = pneg %p50
        $region42: #{tpu_custom_call.1} parent=39 // pred_check_branch
          %249 = sbr.rel (%p247) target = $region44
        $region43: #{tpu_custom_call.1} parent=39 // pred_region
          %p250 = scmp.lt.s32.totalorder %s23, 1
          %s251 = scalar_select %p250, %s23, 1
          %p252 = scmp.lt.s32.totalorder %s24, 1
          %s253 = scalar_select %p252, %s24, 1
          %s254 = smul.addr %s251, 2
          %s255 = sadd.s32 %s253, %s254
          %s256 = smul.addr %s255, 4
          %s257 = scalar_lea.vmem %s0, %s256
        $region44: #{tpu_custom_call.1} parent=39 // pred_fallthru
          _
      $region40: #{tpu_custom_call.1} parent=5 // pred_fallthru
        _
      %p258 = scmp.le.s32.totalorder 1, %s16
      %p259 = scmp.lt.s32.totalorder %s16, 5
      %p260 = pnand %p258, %p259
      %p261 = pneg %p260
      // Predicated region
      $region45: #{tpu_custom_call.1} parent=5 // pred_check
        _
      $region46: #{tpu_custom_call.1} parent=5 // pred_check_branch
        %263 = sbr.rel (%p260) target = $region48
      $region47: #{tpu_custom_call.1} parent=5 // pred_region
        %s264 = ssub.s32 %s16, 1
        %p265 = scmp.lt.s32.totalorder %s25, 1
        %s266 = scalar_select %p265, %s25, 1
        %p267 = scmp.lt.s32.totalorder %s26, 1
        %s268 = scalar_select %p267, %s26, 1
        %s269 = smul.addr %s266, 2
        %s270 = sadd.s32 %s268, %s269
        %s271 = smul.addr %s270, 4
        %s272 = scalar_lea.vmem %s0, %s271
        %p273 = pneg %p56
        %p274 = pneg %p53
        %p275 = pneg %p77
        %p276 = pneg %p74
        %p277 = pneg %p98
        %p278 = pneg %p95
        %p279 = pneg %p119
        %p280 = pneg %p116
        %p281 = pneg %p140
        %p282 = pneg %p137
        %p283 = pneg %p161
        %p284 = pneg %p158
        %p285 = pneg %p182
        %p286 = pneg %p179
        %p287 = pneg %p210
        %p288 = pneg %p207
        %s289 = sand.u32 %s197, 1
        %s290 = scalar_lea.sflag [#allocation7], %s289
        %s291 = sand.u32 %s197, 1
        %s292 = smul.addr %s291, 4
        %s293 = scalar_lea.vmem [#allocation6], %s292
        %p294 = scmp.lt.s32.totalorder %s25, 1
        %s295 = scalar_select %p294, %s25, 1
        %p296 = scmp.lt.s32.totalorder %s26, 1
        %s297 = scalar_select %p296, %s26, 1
        %s298 = smul.addr %s295, 2
        %s299 = sadd.s32 %s297, %s298
        %s300 = smul.addr %s299, 4
        %s301 = scalar_lea.vmem %s0, %s300
        %v303 = vld [vmem:[%s301] sm:$0xf]
        %p304 = scmp.eq.s32.totalorder %s26, 0
        // Predicated region
        $region49: #{tpu_custom_call.1} parent=47 // pred_check
          %p305 = pneg %p304
        $region50: #{tpu_custom_call.1} parent=47 // pred_check_branch
          %307 = sbr.rel (%p305) target = $region52
        $region51: #{tpu_custom_call.1} parent=47 // pred_region
          %vm308 = vcmask 3072
          %309 = vst.msk [vmem:[#allocation2] sm:$0xf] %vm308, 0
          %310 = vst.msk [vmem:[#allocation4] sm:$0xf] %vm308, 0
        $region52: #{tpu_custom_call.1} parent=47 // pred_fallthru
          _
        %p311 = scmp.gt.s32.totalorder %s26, 0
        // Predicated region
        $region53: #{tpu_custom_call.1} parent=47 // pred_check
          %p312 = pneg %p311
        $region54: #{tpu_custom_call.1} parent=47 // pred_check_branch
          %314 = sbr.rel (%p312) target = $region56
        $region55: #{tpu_custom_call.1} parent=47 // pred_region
          %v315 = vld [vmem:[#allocation2 + $0x4] sm:$0xf]
          %vm316 = vcmask 3072
          %317 = vst.msk [vmem:[#allocation2] sm:$0xf] %vm316, %v315
          %v318 = vld [vmem:[#allocation4 + $0x4] sm:$0xf]
          %319 = vst.msk [vmem:[#allocation4] sm:$0xf] %vm316, %v318
        $region56: #{tpu_custom_call.1} parent=47 // pred_fallthru
          _
        %321 = vrot.lane.b32.xlu0 %v303, 1
        %v322 = vpop.permute.xlu0 %321
        %v323 = vrot.slane %v322, 4
        %vm324 = vcmask 7168
        %v325 = vsel %vm324, %v323, %v322
        %vm327 = vcmask 1043464
        %vm328 = vcmask 7172
        %vm329 = vmor %vm328, %vm327
        %330 = vst.msk [vmem:[#allocation2] sm:$0xff] %vm329, %v325
        %v331 = vld [vmem:[#allocation2] sm:$0xf]
        %332 = vst [vmem:[#allocation3] sm:$0xf] %v331
        %v333 = vld [vmem:[#allocation2] sm:$0xff]
        %v335 = vunpack.c.l.b16 %v333
        %v336 = vunpack.c.h.b16 %v333
        %v337 = vpack.c.b16 %v335, %v335
        %v338 = vpack.c.b16 %v336, %v336
        %339 = vrot.lane.b32.xlu0 %v337, 127
        %v340 = vpop.permute.xlu0 %339
        %341 = vrot.lane.b32.xlu0 %v338, 127
        %v342 = vpop.permute.xlu0 %341
        %vm343 = vcmask 1039360
        %v344 = vsel %vm343, %v340, %v342
        %346 = vst [vmem:[#allocation3] sm:$0xf0] %v344
        %v347 = vld [vmem:[#allocation3] sm:$0xff]
        %v348 = vld [vmem:[%s1] sm:$0xf]
        %v349 = vld [vmem:[%s2] sm:$0xff]
        %351 = vset.pattern.permute.xlu0 0
        %352 = vperm.xlu0 %351, %v349
        %v353 = vpop.permute.xlu0 %352
        %vm355 = vcmask 130048
        %v357 = vsel %vm355, %v348, 0
        %359 = vmatprep.subr.bf16.mxu0 0
        %360 = vmatpush1.bf16.msra.mxu0 %v347
        %361 = vmatprep.subr.bf16.mxu0 0
        %362 = vmatpush1.bf16.msra.mxu0 0
        %363 = vmatprep.subr.bf16.mxu0 0
        %364 = vmatpush1.bf16.msra.mxu0 0
        %365 = vmatprep.subr.bf16.mxu0 0
        %366 = vmatpush1.bf16.msra.mxu0 0
        %367 = vmatprep.subr.bf16.mxu0 0
        %368 = vmatpush1.bf16.msra.mxu0 0
        %369 = vmatprep.subr.bf16.mxu0 0
        %370 = vmatpush1.bf16.msra.mxu0 0
        %371 = vmatprep.subr.bf16.mxu0 0
        %372 = vmatpush1.bf16.msra.mxu0 0
        %373 = vmatprep.subr.bf16.mxu0 0
        %374 = vmatpush1.bf16.msra.mxu0 0
        %375 = vmatprep.subr.bf16.mxu0 0
        %376 = vmatpush1.bf16.msra.mxu0 0
        %377 = vmatprep.subr.bf16.mxu0 0
        %378 = vmatpush1.bf16.msra.mxu0 0
        %379 = vmatprep.subr.bf16.mxu0 0
        %380 = vmatpush1.bf16.msra.mxu0 0
        %381 = vmatprep.subr.bf16.mxu0 0
        %382 = vmatpush1.bf16.msra.mxu0 0
        %383 = vmatprep.subr.bf16.mxu0 0
        %384 = vmatpush1.bf16.msra.mxu0 0
        %385 = vmatprep.subr.bf16.mxu0 0
        %386 = vmatpush1.bf16.msra.mxu0 0
        %387 = vmatprep.subr.bf16.mxu0 0
        %388 = vmatpush1.bf16.msra.mxu0 0
        %389 = vmatprep.subr.bf16.mxu0 0
        %390 = vmatpush1.bf16.msra.mxu0 0
        %391 = vmatprep.mubr.bf16.mxu0 0
        %392 = vmatmul.mubr.bf16.gmra.mrb[0].mxu0 %v357
        %v393 = vpop.f32.mrb[0].mxu0
        %v394 = vadd.f32 %v353, %v393
        %v395 = vpop.f32.mrb[0].mxu0
        %v396 = vpop.f32.mrb[0].mxu0
        %v397 = vpop.f32.mrb[0].mxu0
        %398 = vdwg.mxu0
        %v399 = vmax.f32 %v394, 0.0
        %v400 = vpack.c.bf16 %v399, %v399
        %v402 = vunpack.c.l.b16 %v400
        %v403 = vpack.c.b16 %v402, %v402
        %404 = vrot.lane.b32.xlu0 %v403, 1
        %v405 = vpop.permute.xlu0 %404
        %v406 = vrot.slane %v405, 4
        %v407 = vsel %vm324, %v406, %v405
        %409 = vst.msk [vmem:[#allocation4] sm:$0xff] %vm329, %v407
        %v410 = vld [vmem:[#allocation4] sm:$0xf]
        %411 = vst [vmem:[#allocation5] sm:$0xf] %v410
        %v412 = vld [vmem:[#allocation4] sm:$0xff]
        %v414 = vunpack.c.l.b16 %v412
        %v415 = vunpack.c.h.b16 %v412
        %v416 = vpack.c.b16 %v414, %v414
        %v417 = vpack.c.b16 %v415, %v415
        %418 = vrot.lane.b32.xlu0 %v416, 127
        %v419 = vpop.permute.xlu0 %418
        %420 = vrot.lane.b32.xlu0 %v417, 127
        %v421 = vpop.permute.xlu0 %420
        %v422 = vsel %vm343, %v419, %v421
        %424 = vst [vmem:[#allocation5] sm:$0xf0] %v422
        %v425 = vld [vmem:[#allocation5] sm:$0xff]
        %v426 = vld [vmem:[%s3] sm:$0xf]
        %v427 = vld [vmem:[%s4] sm:$0xff]
        %429 = vset.pattern.permute.xlu0 0
        %430 = vperm.xlu0 %429, %v427
        %v431 = vpop.permute.xlu0 %430
        %v434 = vsel %vm355, %v426, 0
        %436 = vmatprep.subr.bf16.mxu0 0
        %437 = vmatpush1.bf16.msra.mxu0 %v425
        %438 = vmatprep.subr.bf16.mxu0 0
        %439 = vmatpush1.bf16.msra.mxu0 0
        %440 = vmatprep.subr.bf16.mxu0 0
        %441 = vmatpush1.bf16.msra.mxu0 0
        %442 = vmatprep.subr.bf16.mxu0 0
        %443 = vmatpush1.bf16.msra.mxu0 0
        %444 = vmatprep.subr.bf16.mxu0 0
        %445 = vmatpush1.bf16.msra.mxu0 0
        %446 = vmatprep.subr.bf16.mxu0 0
        %447 = vmatpush1.bf16.msra.mxu0 0
        %448 = vmatprep.subr.bf16.mxu0 0
        %449 = vmatpush1.bf16.msra.mxu0 0
        %450 = vmatprep.subr.bf16.mxu0 0
        %451 = vmatpush1.bf16.msra.mxu0 0
        %452 = vmatprep.subr.bf16.mxu0 0
        %453 = vmatpush1.bf16.msra.mxu0 0
        %454 = vmatprep.subr.bf16.mxu0 0
        %455 = vmatpush1.bf16.msra.mxu0 0
        %456 = vmatprep.subr.bf16.mxu0 0
        %457 = vmatpush1.bf16.msra.mxu0 0
        %458 = vmatprep.subr.bf16.mxu0 0
        %459 = vmatpush1.bf16.msra.mxu0 0
        %460 = vmatprep.subr.bf16.mxu0 0
        %461 = vmatpush1.bf16.msra.mxu0 0
        %462 = vmatprep.subr.bf16.mxu0 0
        %463 = vmatpush1.bf16.msra.mxu0 0
        %464 = vmatprep.subr.bf16.mxu0 0
        %465 = vmatpush1.bf16.msra.mxu0 0
        %466 = vmatprep.subr.bf16.mxu0 0
        %467 = vmatpush1.bf16.msra.mxu0 0
        %468 = vmatprep.mubr.bf16.mxu0 0
        %469 = vmatmul.mubr.bf16.gmra.mrb[0].mxu0 %v434
        %v470 = vpop.f32.mrb[0].mxu0
        %v471 = vadd.f32 %v431, %v470
        %v472 = vpop.f32.mrb[0].mxu0
        %v473 = vpop.f32.mrb[0].mxu0
        %v474 = vpop.f32.mrb[0].mxu0
        %475 = vdwg.mxu0
        %v476 = vmax.f32 %v471, 0.0
        %v477 = vld [vmem:[%s5] sm:$0xf]
        %v478 = vld [vmem:[%s6] sm:$0xff]
        %480 = vset.pattern.permute.xlu0 0
        %481 = vperm.xlu0 %480, %v478
        %v482 = vpop.permute.xlu0 %481
        %vm484 = vcmask 64512
        %v486 = vsel %vm484, %v477, 0
        %vm488 = vcmask 1043456
        %v490 = vsel %vm488, %v303, 0
        %492 = vmatprep.subr.bf16.mxu0 0
        %493 = vmatpush1.bf16.msra.mxu0 %v490
        %494 = vmatprep.subr.bf16.mxu0 0
        %495 = vmatpush1.bf16.msra.mxu0 0
        %496 = vmatprep.subr.bf16.mxu0 0
        %497 = vmatpush1.bf16.msra.mxu0 0
        %498 = vmatprep.subr.bf16.mxu0 0
        %499 = vmatpush1.bf16.msra.mxu0 0
        %500 = vmatprep.subr.bf16.mxu0 0
        %501 = vmatpush1.bf16.msra.mxu0 0
        %502 = vmatprep.subr.bf16.mxu0 0
        %503 = vmatpush1.bf16.msra.mxu0 0
        %504 = vmatprep.subr.bf16.mxu0 0
        %505 = vmatpush1.bf16.msra.mxu0 0
        %506 = vmatprep.subr.bf16.mxu0 0
        %507 = vmatpush1.bf16.msra.mxu0 0
        %508 = vmatprep.subr.bf16.mxu0 0
        %509 = vmatpush1.bf16.msra.mxu0 0
        %510 = vmatprep.subr.bf16.mxu0 0
        %511 = vmatpush1.bf16.msra.mxu0 0
        %512 = vmatprep.subr.bf16.mxu0 0
        %513 = vmatpush1.bf16.msra.mxu0 0
        %514 = vmatprep.subr.bf16.mxu0 0
        %515 = vmatpush1.bf16.msra.mxu0 0
        %516 = vmatprep.subr.bf16.mxu0 0
        %517 = vmatpush1.bf16.msra.mxu0 0
        %518 = vmatprep.subr.bf16.mxu0 0
        %519 = vmatpush1.bf16.msra.mxu0 0
        %520 = vmatprep.subr.bf16.mxu0 0
        %521 = vmatpush1.bf16.msra.mxu0 0
        %522 = vmatprep.subr.bf16.mxu0 0
        %523 = vmatpush1.bf16.msra.mxu0 0
        %524 = vmatprep.mubr.bf16.mxu0 0
        %525 = vmatmul.mubr.bf16.gmra.mrb[0].mxu0 %v486
        %v526 = vpop.f32.mrb[0].mxu0
        %v527 = vadd.f32 %v482, %v526
        %v528 = vpop.f32.mrb[0].mxu0
        %v529 = vpop.f32.mrb[0].mxu0
        %v530 = vpop.f32.mrb[0].mxu0
        %531 = vdwg.mxu0
        %v532 = vadd.f32 %v476, %v527
        %v533 = vmax.f32 %v532, 0.0
        %v534 = vpack.c.bf16 %v533, %v533
        %535 = vst [vmem:[%s293] sm:$0xf] %v534
        %s536 = sand.u32 %s197, 1
        %s537 = scalar_lea.sflag [#allocation7], %s536
        %s538 = sand.u32 %s197, 1
        %s539 = smul.addr %s538, 4
        %s540 = scalar_lea.vmem [#allocation6], %s539
        // Predicated region
        $region57: #{tpu_custom_call.1} parent=47 // pred_check
          %p541 = pneg %p207
        $region58: #{tpu_custom_call.1} parent=47 // pred_check_branch
          %543 = sbr.rel (%p541) target = $region60
        $region59: #{tpu_custom_call.1} parent=47 // pred_region
          %s545 = ssub.s32 64, 64
          %546 = vsyncadd %s537, %s545
          %s547 = smul.addr %s25, 2
          %s548 = sadd.s32 %s26, %s547
          %s549 = smul.addr %s548, 64
          %s550 = scalar_lea.hbm %s7, %s549
          %s552 = sshll.u32 %s540, 4
          %s553 = int_to_ptr.vmem [resolvable:$true] %s552
          %555 = dma.vmem_to_hbm [thread:$0]  %s553, 64, %s550, %s537
        $region60: #{tpu_custom_call.1} parent=47 // pred_fallthru
          _
      $region48: #{tpu_custom_call.1} parent=5 // pred_fallthru
        _
      %p556 = scmp.le.s32.totalorder 2, %s16
      // Predicated region
      $region61: #{tpu_custom_call.1} parent=5 // pred_check
        %p557 = pneg %p556
      $region62: #{tpu_custom_call.1} parent=5 // pred_check_branch
        %559 = sbr.rel (%p557) target = $region64
      $region63: #{tpu_custom_call.1} parent=5 // pred_region
        %s560 = ssub.s32 %s16, 2
        // Predicated region
        $region65: #{tpu_custom_call.1} parent=63 // pred_check
          %p561 = pneg %p213
        $region66: #{tpu_custom_call.1} parent=63 // pred_check_branch
          %563 = sbr.rel (%p561) target = $region68
        $region67: #{tpu_custom_call.1} parent=63 // pred_region
          %s564 = sand.u32 %s198, 1
          %s565 = scalar_lea.sflag [#allocation7], %s564
          %s566 = sand.u32 %s198, 1
          %s567 = smul.addr %s566, 4
          %s568 = scalar_lea.vmem [#allocation6], %s567
          %569 = dma.done %s565, 64
        $region68: #{tpu_custom_call.1} parent=63 // pred_fallthru
          _
      $region64: #{tpu_custom_call.1} parent=5 // pred_fallthru
        _
    $region6: #{tpu_custom_call.1} parent=1 // loop_footer
      %s20 = sadd.s32 1, %s16
    $region7: #{tpu_custom_call.1} parent=1 // loop_footer_branch
      %15 = sbr.rel target = $region3
    $region8: #{tpu_custom_call.1} parent=1 // loop_exit
      _
    %570 = vsyncpa [#allocation7], 1
    %s571 = scalar_lea.sflag [#allocation7], 1
    %572 = vsyncpa %s571, 1

</llo_original>
